<compile_context>
chip_gen: v5e
topology: v5e:2x2
jax: 0.10.0
libtpu: 0.0.40
codegen_flags: <defaults>
</compile_context>

<pallas_src>
import functools
import math

import jax
import jax.numpy as jnp
from jax.experimental import pallas as pl
from jax.experimental.pallas import tpu as pltpu


# ----------------------------------------------------------------------------
# Fused multi-head directed-GAT kernel
# ----------------------------------------------------------------------------
def _cross_gat_kernel(hsrc_ref, hdst_ref, mask_ref, w_ref, bw_ref,
                      asrc_ref, adst_ref, ba_ref, out_ref,
                      *, nheads, f_out, alpha):
    """All heads in one invocation.

    hsrc_ref : [Ns, Fin]          source-node input features ('hb' field)
    hdst_ref : [Nd, Fin]          destination-node input features
    mask_ref : [Nd, Ns]           1.0 where an edge dst<-src exists
    w_ref    : [Fin, H*Fo]        per-head W (transposed), lane-concatenated
    bw_ref   : [1,  H*Fo]         per-head W bias, lane-concatenated
    asrc_ref : [H*Fo, H]          block-diagonal selector: col h = a_src of head h
    adst_ref : [H*Fo, H]          block-diagonal selector: col h = a_dst of head h
    ba_ref   : [1, H]             per-head `a` bias
    out_ref  : [Nd, H*Fo]         h_itype (heads concatenated on the lane axis)
    """
    # Shared linear transform for all heads at once (single wide matmul/side).
    wh_s = jnp.dot(hsrc_ref[...], w_ref[...],
                   preferred_element_type=jnp.float32) + bw_ref[...]   # [Ns, H*Fo]
    wh_d = jnp.dot(hdst_ref[...], w_ref[...],
                   preferred_element_type=jnp.float32) + bw_ref[...]   # [Nd, H*Fo]

    # Per-head attention logit halves via block-diagonal selectors (on the MXU
    # instead of a cross-lane reduce on the XLU).
    e_s = jnp.dot(wh_s, asrc_ref[...],
                  preferred_element_type=jnp.float32)                  # [Ns, H]
    e_d = jnp.dot(wh_d, adst_ref[...],
                  preferred_element_type=jnp.float32) + ba_ref[...]    # [Nd, H]
    e_s_t = jnp.transpose(e_s)                                         # [H, Ns]

    edge_mask = mask_ref[...] > 0.0                                    # [Nd, Ns]
    neg = jnp.finfo(jnp.float32).min

    parts = []
    for h in range(nheads):                       # static unroll (small H)
        # e[i, j] = e_dst[i, h] + e_src[j, h]  (+ bias already folded into e_d)
        e = e_d[:, h:h + 1] + e_s_t[h:h + 1, :]                        # [Nd, Ns]
        e = jnp.where(e > 0, e, alpha * e)                             # LeakyReLU
        e = jnp.where(edge_mask, e, neg)

        # Softmax over incoming edges (src axis).
        m = jnp.max(e, axis=-1, keepdims=True)
        p = jnp.exp(e - m)
        denom = jnp.sum(p, axis=-1, keepdims=True)
        attn = p * pl.reciprocal(denom, approx=True)                   # [Nd, Ns]

        parts.append(jnp.dot(attn, wh_s[:, h * f_out:(h + 1) * f_out],
                             preferred_element_type=jnp.float32))      # [Nd, Fo]

    # One lane-dense store of the concatenated heads.
    out_ref[...] = jnp.concatenate(parts, axis=-1)


# ----------------------------------------------------------------------------
# Wrapper
# ----------------------------------------------------------------------------
def cross_gat_inversed_forward(h_src, h_dst, mask, dst_node_ids, params,
                               *, nheads, alpha):
    """Mirrors CrossGATInversed.forward: returns (h_itype, updated_nodes)."""
    W_all, bW, A_src, A_dst, b_a = params
    ns, f_in = h_src.shape
    nd = h_dst.shape[0]
    f_tot = W_all.shape[1]
    f_out = f_tot // nheads

    kernel = functools.partial(_cross_gat_kernel,
                               nheads=nheads, f_out=f_out, alpha=alpha)

    h_itype = pl.pallas_call(
        kernel,
        out_shape=jax.ShapeDtypeStruct((nd, f_tot), jnp.float32),
        grid=(1,),
        in_specs=[
            pl.BlockSpec((ns, f_in), lambda i: (0, 0)),
            pl.BlockSpec((nd, f_in), lambda i: (0, 0)),
            pl.BlockSpec((nd, ns), lambda i: (0, 0)),
            pl.BlockSpec((f_in, f_tot), lambda i: (0, 0)),
            pl.BlockSpec((1, f_tot), lambda i: (0, 0)),
            pl.BlockSpec((f_tot, nheads), lambda i: (0, 0)),
            pl.BlockSpec((f_tot, nheads), lambda i: (0, 0)),
            pl.BlockSpec((1, nheads), lambda i: (0, 0)),
        ],
        out_specs=pl.BlockSpec((nd, f_tot), lambda i: (0, 0)),
        compiler_params=pltpu.CompilerParams(
            dimension_semantics=("arbitrary",)),
    )(h_src, h_dst, mask, W_all, bW, A_src, A_dst, b_a)

    # `updated_nodes` (dst node ids) is a gather bookkeeping artifact of DGL;
    # with the dense-mask formulation the dst rows are already pre-gathered,
    # so the externally supplied index vector is passed through unchanged.
    return h_itype, dst_node_ids


# ----------------------------------------------------------------------------
# Deterministic parameter construction (torch-equivalent init, fused layout)
# ----------------------------------------------------------------------------
def _xavier(key, shape, fan_in, fan_out, gain=1.414):
    limit = gain * math.sqrt(6.0 / (fan_in + fan_out))
    return jax.random.uniform(key, shape, minval=-limit, maxval=limit,
                              dtype=jnp.float32)


def make_cross_gat_params(key, nheads, f_in, f_out):
    """Per-head parameters (DirectedGATLayerInversed), assembled fused:
       W_all [Fin, H*Fo], bW [1, H*Fo], A_src/A_dst [H*Fo, H] block-diagonal,
       b_a [1, H]."""
    keys = jax.random.split(key, nheads)
    W_cols, bW_cols = [], []
    A_src = jnp.zeros((nheads * f_out, nheads), jnp.float32)
    A_dst = jnp.zeros((nheads * f_out, nheads), jnp.float32)
    b_a = jnp.zeros((1, nheads), jnp.float32)

    for h in range(nheads):
        kw, kbw, ka, kba = jax.random.split(keys[h], 4)
        # self.W = nn.Linear(f_in, f_out); xavier_uniform_(W.weight, gain=1.414)
        W_h = _xavier(kw, (f_in, f_out), f_in, f_out)              # W.weight^T
        bound_w = 1.0 / math.sqrt(f_in)                            # torch bias init
        bW_h = jax.random.uniform(kbw, (f_out,), minval=-bound_w,
                                  maxval=bound_w, dtype=jnp.float32)
        # self.a = nn.Linear(2*f_out, 1); xavier_uniform_(a.weight, gain=1.414)
        a_h = _xavier(ka, (2 * f_out,), 2 * f_out, 1)
        bound_a = 1.0 / math.sqrt(2 * f_out)
        ba_h = jax.random.uniform(kba, (), minval=-bound_a,
                                  maxval=bound_a, dtype=jnp.float32)

        W_cols.append(W_h)
        bW_cols.append(bW_h)
        A_src = A_src.at[h * f_out:(h + 1) * f_out, h].set(a_h[:f_out])
        A_dst = A_dst.at[h * f_out:(h + 1) * f_out, h].set(a_h[f_out:])
        b_a = b_a.at[0, h].set(ba_h)

    W_all = jnp.concatenate(W_cols, axis=1)                        # [Fin, H*Fo]
    bW = jnp.concatenate(bW_cols, axis=0).reshape(1, nheads * f_out)
    return (W_all, bW, A_src, A_dst, b_a)


# ----------------------------------------------------------------------------
if __name__ == "__main__":
    nfeats, nhid, nheads, alpha = 32, 32, 4, 0.2
    Ns, Nd = 8, 8        # src nodes (turn t+offset), dst nodes (turn t)

    key = jax.random.PRNGKey(0)
    k_src, k_dst, k_mask, k_par = jax.random.split(key, 4)

    h_src = jax.random.normal(k_src, (Ns, nfeats), jnp.float32)   # 'hb' on src nodes
    h_dst = jax.random.normal(k_dst, (Nd, nfeats), jnp.float32)   # 'hb' on dst nodes
    # Dense dst x src adjacency for the 'counter_bw' edge set; every dst row is
    # guaranteed at least one incoming edge (see TODO about empty rows).
    mask = (jax.random.uniform(k_mask, (Nd, Ns)) > 0.35).astype(jnp.float32)
    mask = jnp.maximum(mask, jnp.eye(Nd, Ns, dtype=jnp.float32))
    dst_node_ids = jnp.arange(Nd, dtype=jnp.int32)

    params = make_cross_gat_params(k_par, nheads, nfeats, nhid // nheads)

    h_itype, updated_nodes = cross_gat_inversed_forward(
        h_src, h_dst, mask, dst_node_ids, params, nheads=nheads, alpha=alpha)
    h_itype = jax.block_until_ready(h_itype)

    assert h_itype.shape == (Nd, nhid), h_itype.shape
    assert updated_nodes.shape == (Nd,)
    assert bool(jnp.all(jnp.isfinite(h_itype)))
    print("KERNEL_OK")
</pallas_src>

<mosaic_0001>
module attributes {stable_mosaic.version = 11 : i64} {
  func.func @_cross_gat_kernel(%arg0: i32, %arg1: memref<8x32xf32, #tpu.memory_space<vmem>>, %arg2: memref<8x32xf32, #tpu.memory_space<vmem>>, %arg3: memref<8x8xf32, #tpu.memory_space<vmem>>, %arg4: memref<32x32xf32, #tpu.memory_space<vmem>>, %arg5: memref<1x32xf32, #tpu.memory_space<vmem>>, %arg6: memref<32x4xf32, #tpu.memory_space<vmem>>, %arg7: memref<32x4xf32, #tpu.memory_space<vmem>>, %arg8: memref<1x4xf32, #tpu.memory_space<vmem>>, %arg9: memref<8x32xf32, #tpu.memory_space<vmem>>) attributes {dimension_semantics = [#tpu.dimension_semantics<arbitrary>], iteration_bounds = array<i64: 1>, scalar_prefetch = 0 : i64, scratch_operands = 0 : i64, tpu.core_type = #tpu.core_type<tc>, window_params = [{pipeline_mode = #tpu.pipeline_mode<synchronous>, transform_indices = @transform_0, window_bounds = array<i64: 8, 32>}, {pipeline_mode = #tpu.pipeline_mode<synchronous>, transform_indices = @transform_1, window_bounds = array<i64: 8, 32>}, {pipeline_mode = #tpu.pipeline_mode<synchronous>, transform_indices = @transform_2, window_bounds = array<i64: 8, 8>}, {pipeline_mode = #tpu.pipeline_mode<synchronous>, transform_indices = @transform_3, window_bounds = array<i64: 32, 32>}, {pipeline_mode = #tpu.pipeline_mode<synchronous>, transform_indices = @transform_4, window_bounds = array<i64: 1, 32>}, {pipeline_mode = #tpu.pipeline_mode<synchronous>, transform_indices = @transform_5, window_bounds = array<i64: 32, 4>}, {pipeline_mode = #tpu.pipeline_mode<synchronous>, transform_indices = @transform_6, window_bounds = array<i64: 32, 4>}, {pipeline_mode = #tpu.pipeline_mode<synchronous>, transform_indices = @transform_7, window_bounds = array<i64: 1, 4>}, {pipeline_mode = #tpu.pipeline_mode<synchronous>, transform_indices = @transform_8, window_bounds = array<i64: 8, 32>}]} {
    %c0 = arith.constant 0 : index
    %c0_0 = arith.constant 0 : index
    %0 = vector.load %arg1[%c0, %c0_0] : memref<8x32xf32, #tpu.memory_space<vmem>>, vector<8x32xf32>
    %c0_1 = arith.constant 0 : index
    %c0_2 = arith.constant 0 : index
    %1 = vector.load %arg4[%c0_1, %c0_2] : memref<32x32xf32, #tpu.memory_space<vmem>>, vector<32x32xf32>
    %cst = arith.constant dense<0.000000e+00> : vector<8x32xf32>
    %2 = tpu.matmul %0, %1, %cst {dimension_numbers = #tpu.dot_dimension_numbers<[1], [0], [0], [1], [0, 0, 1, 1], [], []>} : vector<8x32xf32>, vector<32x32xf32>, vector<8x32xf32> -> vector<8x32xf32>
    %c0_3 = arith.constant 0 : index
    %c0_4 = arith.constant 0 : index
    %3 = vector.load %arg5[%c0_3, %c0_4] : memref<1x32xf32, #tpu.memory_space<vmem>>, vector<1x32xf32>
    %4 = vector.broadcast %3 : vector<1x32xf32> to vector<8x32xf32>
    %5 = arith.addf %2, %4 : vector<8x32xf32>
    %c0_5 = arith.constant 0 : index
    %c0_6 = arith.constant 0 : index
    %6 = vector.load %arg2[%c0_5, %c0_6] : memref<8x32xf32, #tpu.memory_space<vmem>>, vector<8x32xf32>
    %c0_7 = arith.constant 0 : index
    %c0_8 = arith.constant 0 : index
    %7 = vector.load %arg4[%c0_7, %c0_8] : memref<32x32xf32, #tpu.memory_space<vmem>>, vector<32x32xf32>
    %cst_9 = arith.constant dense<0.000000e+00> : vector<8x32xf32>
    %8 = tpu.matmul %6, %7, %cst_9 {dimension_numbers = #tpu.dot_dimension_numbers<[1], [0], [0], [1], [0, 0, 1, 1], [], []>} : vector<8x32xf32>, vector<32x32xf32>, vector<8x32xf32> -> vector<8x32xf32>
    %c0_10 = arith.constant 0 : index
    %c0_11 = arith.constant 0 : index
    %9 = vector.load %arg5[%c0_10, %c0_11] : memref<1x32xf32, #tpu.memory_space<vmem>>, vector<1x32xf32>
    %10 = vector.broadcast %9 : vector<1x32xf32> to vector<8x32xf32>
    %11 = arith.addf %8, %10 : vector<8x32xf32>
    %c0_12 = arith.constant 0 : index
    %c0_13 = arith.constant 0 : index
    %12 = vector.load %arg6[%c0_12, %c0_13] : memref<32x4xf32, #tpu.memory_space<vmem>>, vector<32x4xf32>
    %cst_14 = arith.constant dense<0.000000e+00> : vector<8x4xf32>
    %13 = tpu.matmul %5, %12, %cst_14 {dimension_numbers = #tpu.dot_dimension_numbers<[1], [0], [0], [1], [0, 0, 1, 1], [], []>} : vector<8x32xf32>, vector<32x4xf32>, vector<8x4xf32> -> vector<8x4xf32>
    %c0_15 = arith.constant 0 : index
    %c0_16 = arith.constant 0 : index
    %14 = vector.load %arg7[%c0_15, %c0_16] : memref<32x4xf32, #tpu.memory_space<vmem>>, vector<32x4xf32>
    %cst_17 = arith.constant dense<0.000000e+00> : vector<8x4xf32>
    %15 = tpu.matmul %11, %14, %cst_17 {dimension_numbers = #tpu.dot_dimension_numbers<[1], [0], [0], [1], [0, 0, 1, 1], [], []>} : vector<8x32xf32>, vector<32x4xf32>, vector<8x4xf32> -> vector<8x4xf32>
    %c0_18 = arith.constant 0 : index
    %c0_19 = arith.constant 0 : index
    %16 = vector.load %arg8[%c0_18, %c0_19] : memref<1x4xf32, #tpu.memory_space<vmem>>, vector<1x4xf32>
    %17 = vector.broadcast %16 : vector<1x4xf32> to vector<8x4xf32>
    %18 = arith.addf %15, %17 : vector<8x4xf32>
    %19 = tpu.transpose %13, [1, 0] : vector<8x4xf32> -> vector<4x8xf32>
    %c0_20 = arith.constant 0 : index
    %c0_21 = arith.constant 0 : index
    %20 = vector.load %arg3[%c0_20, %c0_21] : memref<8x8xf32, #tpu.memory_space<vmem>>, vector<8x8xf32>
    %cst_22 = arith.constant 0.000000e+00 : f32
    %21 = vector.broadcast %cst_22 : f32 to vector<8x8xf32>
    %22 = arith.cmpf ogt, %20, %21 : vector<8x8xf32>
    %23 = vector.extract_strided_slice %18 {offsets = [0, 0], sizes = [8, 1], strides = [1, 1]} : vector<8x4xf32> to vector<8x1xf32>
    %24 = vector.extract_strided_slice %19 {offsets = [0, 0], sizes = [1, 8], strides = [1, 1]} : vector<4x8xf32> to vector<1x8xf32>
    %25 = vector.broadcast %23 : vector<8x1xf32> to vector<8x8xf32>
    %26 = vector.broadcast %24 : vector<1x8xf32> to vector<8x8xf32>
    %27 = arith.addf %25, %26 : vector<8x8xf32>
    %cst_23 = arith.constant 0.000000e+00 : f32
    %28 = vector.broadcast %cst_23 : f32 to vector<8x8xf32>
    %29 = arith.cmpf ogt, %27, %28 : vector<8x8xf32>
    %cst_24 = arith.constant 2.000000e-01 : f32
    %30 = vector.broadcast %cst_24 : f32 to vector<8x8xf32>
    %31 = arith.mulf %30, %27 : vector<8x8xf32>
    %32 = arith.select %29, %27, %31 : vector<8x8xi1>, vector<8x8xf32>
    %cst_25 = arith.constant -3.40282347E+38 : f32
    %33 = vector.broadcast %cst_25 : f32 to vector<8x8xf32>
    %34 = arith.select %22, %32, %33 : vector<8x8xi1>, vector<8x8xf32>
    %cst_26 = arith.constant dense<0xFF800000> : vector<8xf32>
    %35 = vector.multi_reduction <maximumf>, %34, %cst_26 [1] : vector<8x8xf32> to vector<8xf32>
    %36 = vector.shape_cast %35 : vector<8xf32> to vector<8x1xf32>
    %37 = vector.broadcast %36 : vector<8x1xf32> to vector<8x8xf32>
    %38 = arith.subf %34, %37 : vector<8x8xf32>
    %39 = math.exp %38 : vector<8x8xf32>
    %cst_27 = arith.constant dense<0.000000e+00> : vector<8xf32>
    %40 = vector.multi_reduction <add>, %39, %cst_27 [1] : vector<8x8xf32> to vector<8xf32>
    %41 = vector.shape_cast %40 : vector<8xf32> to vector<8x1xf32>
    %42 = tpu.reciprocal %41 {approx = true} : vector<8x1xf32> -> vector<8x1xf32>
    %43 = vector.broadcast %42 : vector<8x1xf32> to vector<8x8xf32>
    %44 = arith.mulf %39, %43 : vector<8x8xf32>
    %45 = vector.extract_strided_slice %5 {offsets = [0, 0], sizes = [8, 8], strides = [1, 1]} : vector<8x32xf32> to vector<8x8xf32>
    %cst_28 = arith.constant dense<0.000000e+00> : vector<8x8xf32>
    %46 = tpu.matmul %44, %45, %cst_28 {dimension_numbers = #tpu.dot_dimension_numbers<[1], [0], [0], [1], [0, 0, 1, 1], [], []>} : vector<8x8xf32>, vector<8x8xf32>, vector<8x8xf32> -> vector<8x8xf32>
    %47 = vector.extract_strided_slice %18 {offsets = [0, 1], sizes = [8, 1], strides = [1, 1]} : vector<8x4xf32> to vector<8x1xf32>
    %48 = vector.extract_strided_slice %19 {offsets = [1, 0], sizes = [1, 8], strides = [1, 1]} : vector<4x8xf32> to vector<1x8xf32>
    %49 = vector.broadcast %47 : vector<8x1xf32> to vector<8x8xf32>
    %50 = vector.broadcast %48 : vector<1x8xf32> to vector<8x8xf32>
    %51 = arith.addf %49, %50 : vector<8x8xf32>
    %cst_29 = arith.constant 0.000000e+00 : f32
    %52 = vector.broadcast %cst_29 : f32 to vector<8x8xf32>
    %53 = arith.cmpf ogt, %51, %52 : vector<8x8xf32>
    %cst_30 = arith.constant 2.000000e-01 : f32
    %54 = vector.broadcast %cst_30 : f32 to vector<8x8xf32>
    %55 = arith.mulf %54, %51 : vector<8x8xf32>
    %56 = arith.select %53, %51, %55 : vector<8x8xi1>, vector<8x8xf32>
    %cst_31 = arith.constant -3.40282347E+38 : f32
    %57 = vector.broadcast %cst_31 : f32 to vector<8x8xf32>
    %58 = arith.select %22, %56, %57 : vector<8x8xi1>, vector<8x8xf32>
    %cst_32 = arith.constant dense<0xFF800000> : vector<8xf32>
    %59 = vector.multi_reduction <maximumf>, %58, %cst_32 [1] : vector<8x8xf32> to vector<8xf32>
    %60 = vector.shape_cast %59 : vector<8xf32> to vector<8x1xf32>
    %61 = vector.broadcast %60 : vector<8x1xf32> to vector<8x8xf32>
    %62 = arith.subf %58, %61 : vector<8x8xf32>
    %63 = math.exp %62 : vector<8x8xf32>
    %cst_33 = arith.constant dense<0.000000e+00> : vector<8xf32>
    %64 = vector.multi_reduction <add>, %63, %cst_33 [1] : vector<8x8xf32> to vector<8xf32>
    %65 = vector.shape_cast %64 : vector<8xf32> to vector<8x1xf32>
    %66 = tpu.reciprocal %65 {approx = true} : vector<8x1xf32> -> vector<8x1xf32>
    %67 = vector.broadcast %66 : vector<8x1xf32> to vector<8x8xf32>
    %68 = arith.mulf %63, %67 : vector<8x8xf32>
    %69 = vector.extract_strided_slice %5 {offsets = [0, 8], sizes = [8, 8], strides = [1, 1]} : vector<8x32xf32> to vector<8x8xf32>
    %cst_34 = arith.constant dense<0.000000e+00> : vector<8x8xf32>
    %70 = tpu.matmul %68, %69, %cst_34 {dimension_numbers = #tpu.dot_dimension_numbers<[1], [0], [0], [1], [0, 0, 1, 1], [], []>} : vector<8x8xf32>, vector<8x8xf32>, vector<8x8xf32> -> vector<8x8xf32>
    %71 = vector.extract_strided_slice %18 {offsets = [0, 2], sizes = [8, 1], strides = [1, 1]} : vector<8x4xf32> to vector<8x1xf32>
    %72 = vector.extract_strided_slice %19 {offsets = [2, 0], sizes = [1, 8], strides = [1, 1]} : vector<4x8xf32> to vector<1x8xf32>
    %73 = vector.broadcast %71 : vector<8x1xf32> to vector<8x8xf32>
    %74 = vector.broadcast %72 : vector<1x8xf32> to vector<8x8xf32>
    %75 = arith.addf %73, %74 : vector<8x8xf32>
    %cst_35 = arith.constant 0.000000e+00 : f32
    %76 = vector.broadcast %cst_35 : f32 to vector<8x8xf32>
    %77 = arith.cmpf ogt, %75, %76 : vector<8x8xf32>
    %cst_36 = arith.constant 2.000000e-01 : f32
    %78 = vector.broadcast %cst_36 : f32 to vector<8x8xf32>
    %79 = arith.mulf %78, %75 : vector<8x8xf32>
    %80 = arith.select %77, %75, %79 : vector<8x8xi1>, vector<8x8xf32>
    %cst_37 = arith.constant -3.40282347E+38 : f32
    %81 = vector.broadcast %cst_37 : f32 to vector<8x8xf32>
    %82 = arith.select %22, %80, %81 : vector<8x8xi1>, vector<8x8xf32>
    %cst_38 = arith.constant dense<0xFF800000> : vector<8xf32>
    %83 = vector.multi_reduction <maximumf>, %82, %cst_38 [1] : vector<8x8xf32> to vector<8xf32>
    %84 = vector.shape_cast %83 : vector<8xf32> to vector<8x1xf32>
    %85 = vector.broadcast %84 : vector<8x1xf32> to vector<8x8xf32>
    %86 = arith.subf %82, %85 : vector<8x8xf32>
    %87 = math.exp %86 : vector<8x8xf32>
    %cst_39 = arith.constant dense<0.000000e+00> : vector<8xf32>
    %88 = vector.multi_reduction <add>, %87, %cst_39 [1] : vector<8x8xf32> to vector<8xf32>
    %89 = vector.shape_cast %88 : vector<8xf32> to vector<8x1xf32>
    %90 = tpu.reciprocal %89 {approx = true} : vector<8x1xf32> -> vector<8x1xf32>
    %91 = vector.broadcast %90 : vector<8x1xf32> to vector<8x8xf32>
    %92 = arith.mulf %87, %91 : vector<8x8xf32>
    %93 = vector.extract_strided_slice %5 {offsets = [0, 16], sizes = [8, 8], strides = [1, 1]} : vector<8x32xf32> to vector<8x8xf32>
    %cst_40 = arith.constant dense<0.000000e+00> : vector<8x8xf32>
    %94 = tpu.matmul %92, %93, %cst_40 {dimension_numbers = #tpu.dot_dimension_numbers<[1], [0], [0], [1], [0, 0, 1, 1], [], []>} : vector<8x8xf32>, vector<8x8xf32>, vector<8x8xf32> -> vector<8x8xf32>
    %95 = vector.extract_strided_slice %18 {offsets = [0, 3], sizes = [8, 1], strides = [1, 1]} : vector<8x4xf32> to vector<8x1xf32>
    %96 = vector.extract_strided_slice %19 {offsets = [3, 0], sizes = [1, 8], strides = [1, 1]} : vector<4x8xf32> to vector<1x8xf32>
    %97 = vector.broadcast %95 : vector<8x1xf32> to vector<8x8xf32>
    %98 = vector.broadcast %96 : vector<1x8xf32> to vector<8x8xf32>
    %99 = arith.addf %97, %98 : vector<8x8xf32>
    %cst_41 = arith.constant 0.000000e+00 : f32
    %100 = vector.broadcast %cst_41 : f32 to vector<8x8xf32>
    %101 = arith.cmpf ogt, %99, %100 : vector<8x8xf32>
    %cst_42 = arith.constant 2.000000e-01 : f32
    %102 = vector.broadcast %cst_42 : f32 to vector<8x8xf32>
    %103 = arith.mulf %102, %99 : vector<8x8xf32>
    %104 = arith.select %101, %99, %103 : vector<8x8xi1>, vector<8x8xf32>
    %cst_43 = arith.constant -3.40282347E+38 : f32
    %105 = vector.broadcast %cst_43 : f32 to vector<8x8xf32>
    %106 = arith.select %22, %104, %105 : vector<8x8xi1>, vector<8x8xf32>
    %cst_44 = arith.constant dense<0xFF800000> : vector<8xf32>
    %107 = vector.multi_reduction <maximumf>, %106, %cst_44 [1] : vector<8x8xf32> to vector<8xf32>
    %108 = vector.shape_cast %107 : vector<8xf32> to vector<8x1xf32>
    %109 = vector.broadcast %108 : vector<8x1xf32> to vector<8x8xf32>
    %110 = arith.subf %106, %109 : vector<8x8xf32>
    %111 = math.exp %110 : vector<8x8xf32>
    %cst_45 = arith.constant dense<0.000000e+00> : vector<8xf32>
    %112 = vector.multi_reduction <add>, %111, %cst_45 [1] : vector<8x8xf32> to vector<8xf32>
    %113 = vector.shape_cast %112 : vector<8xf32> to vector<8x1xf32>
    %114 = tpu.reciprocal %113 {approx = true} : vector<8x1xf32> -> vector<8x1xf32>
    %115 = vector.broadcast %114 : vector<8x1xf32> to vector<8x8xf32>
    %116 = arith.mulf %111, %115 : vector<8x8xf32>
    %117 = vector.extract_strided_slice %5 {offsets = [0, 24], sizes = [8, 8], strides = [1, 1]} : vector<8x32xf32> to vector<8x8xf32>
    %cst_46 = arith.constant dense<0.000000e+00> : vector<8x8xf32>
    %118 = tpu.matmul %116, %117, %cst_46 {dimension_numbers = #tpu.dot_dimension_numbers<[1], [0], [0], [1], [0, 0, 1, 1], [], []>} : vector<8x8xf32>, vector<8x8xf32>, vector<8x8xf32> -> vector<8x8xf32>
    %119 = tpu.concatenate %46, %70, %94, %118 in 1 : vector<8x8xf32>, vector<8x8xf32>, vector<8x8xf32>, vector<8x8xf32> -> vector<8x32xf32>
    %c0_47 = arith.constant 0 : index
    %c0_48 = arith.constant 0 : index
    %120 = vector.load %arg9[%c0_47, %c0_48] : memref<8x32xf32, #tpu.memory_space<vmem>>, vector<8x32xf32>
    tpu.vector_store %arg9[%c0_47, %c0_48], %119 {strides = array<i32>} : memref<8x32xf32, #tpu.memory_space<vmem>>, vector<8x32xf32>,
    return
  }
  func.func @transform_0(%arg0: i32) -> (i32, i32) {
    %c0_i32 = arith.constant 0 : i32
    %c0_i32_0 = arith.constant 0 : i32
    %c0_i32_1 = arith.constant 0 : i32
    return %c0_i32, %c0_i32_0 : i32, i32
  }
  func.func @transform_1(%arg0: i32) -> (i32, i32) {
    %c0_i32 = arith.constant 0 : i32
    %c0_i32_0 = arith.constant 0 : i32
    %c0_i32_1 = arith.constant 0 : i32
    return %c0_i32, %c0_i32_0 : i32, i32
  }
  func.func @transform_2(%arg0: i32) -> (i32, i32) {
    %c0_i32 = arith.constant 0 : i32
    %c0_i32_0 = arith.constant 0 : i32
    %c0_i32_1 = arith.constant 0 : i32
    return %c0_i32, %c0_i32_0 : i32, i32
  }
  func.func @transform_3(%arg0: i32) -> (i32, i32) {
    %c0_i32 = arith.constant 0 : i32
    %c0_i32_0 = arith.constant 0 : i32
    %c0_i32_1 = arith.constant 0 : i32
    return %c0_i32, %c0_i32_0 : i32, i32
  }
  func.func @transform_4(%arg0: i32) -> (i32, i32) {
    %c0_i32 = arith.constant 0 : i32
    %c0_i32_0 = arith.constant 0 : i32
    %c0_i32_1 = arith.constant 0 : i32
    return %c0_i32, %c0_i32_0 : i32, i32
  }
  func.func @transform_5(%arg0: i32) -> (i32, i32) {
    %c0_i32 = arith.constant 0 : i32
    %c0_i32_0 = arith.constant 0 : i32
    %c0_i32_1 = arith.constant 0 : i32
    return %c0_i32, %c0_i32_0 : i32, i32
  }
  func.func @transform_6(%arg0: i32) -> (i32, i32) {
    %c0_i32 = arith.constant 0 : i32
    %c0_i32_0 = arith.constant 0 : i32
    %c0_i32_1 = arith.constant 0 : i32
    return %c0_i32, %c0_i32_0 : i32, i32
  }
  func.func @transform_7(%arg0: i32) -> (i32, i32) {
    %c0_i32 = arith.constant 0 : i32
    %c0_i32_0 = arith.constant 0 : i32
    %c0_i32_1 = arith.constant 0 : i32
    return %c0_i32, %c0_i32_0 : i32, i32
  }
  func.func @transform_8(%arg0: i32) -> (i32, i32) {
    %c0_i32 = arith.constant 0 : i32
    %c0_i32_0 = arith.constant 0 : i32
    %c0_i32_1 = arith.constant 0 : i32
    return %c0_i32, %c0_i32_0 : i32, i32
  }
}

</mosaic_0001>

<llo_original>
// kernel: tpu_custom_call.1
$region0: #{tpu_custom_call.1}
  #allocation0 [shape = 'u32[]', space=smem, size = 0x4, offset = 0x4, fixed_abs, tag = 'smem constant byte address 0x4 - core index']
  #allocation1 [shape = 'u32[72,128]{1,0:T(1,128)}', space=vmem, size = 0x9000, scoped, tag = 'internal scratch']
  %s0 = inlined_call_operand.vmem [shape: f32[8,32], index: 0, kind: input, shape index: {}]
  %s1 = inlined_call_operand.vmem [shape: f32[8,32], index: 1, kind: input, shape index: {}]
  %s2 = inlined_call_operand.vmem [shape: f32[8,8], index: 2, kind: input, shape index: {}]
  %s3 = inlined_call_operand.vmem [shape: f32[32,32], index: 3, kind: input, shape index: {}]
  %s4 = inlined_call_operand.vmem [shape: f32[1,32], index: 4, kind: input, shape index: {}]
  %s5 = inlined_call_operand.vmem [shape: f32[32,4], index: 5, kind: input, shape index: {}]
  %s6 = inlined_call_operand.vmem [shape: f32[32,4], index: 6, kind: input, shape index: {}]
  %s7 = inlined_call_operand.vmem [shape: f32[1,4], index: 7, kind: input, shape index: {}]
  %s8 = inlined_call_operand.hbm [shape: f32[8,32], index: 8, kind: output, shape index: {}]
  %s9 = sld [smem:[#allocation0]]
  $region42: #{tpu_custom_call.1} parent=0
    _
  %s11 = ssub.s32 1, %s9
  %s12 = scalar_select 0, %s11, %s9
  $region1: #{tpu_custom_call.1} parent=0
    #allocation2 [shape = 'u8[4096]{0}', space=vmem, size = 0x1000, scoped, tag = 'output window, operand 0, single buffered']
    #allocation3 [shape = 's32[1]{0}', space=sflag, size = 0x4, scoped, tag = 'scoped memory for tpu_custom_call.1']
    %13 = vsyncpa [#allocation3], 0
    // Predicated region
    $region2: #{tpu_custom_call.1} parent=1 // pred_check
      _
    $region3: #{tpu_custom_call.1} parent=1 // pred_check_branch
      %15 = sbr.rel (0) target = $region5
    $region4: #{tpu_custom_call.1} parent=1 // pred_region
      _
    $region5: #{tpu_custom_call.1} parent=1 // pred_fallthru
      _
    // Predicated region
    $region6: #{tpu_custom_call.1} parent=1 // pred_check
      _
    $region7: #{tpu_custom_call.1} parent=1 // pred_check_branch
      %17 = sbr.rel (0) target = $region9
    $region8: #{tpu_custom_call.1} parent=1 // pred_region
      _
    $region9: #{tpu_custom_call.1} parent=1 // pred_fallthru
      _
    // Predicated region
    $region10: #{tpu_custom_call.1} parent=1 // pred_check
      _
    $region11: #{tpu_custom_call.1} parent=1 // pred_check_branch
      %19 = sbr.rel (0) target = $region13
    $region12: #{tpu_custom_call.1} parent=1 // pred_region
      _
    $region13: #{tpu_custom_call.1} parent=1 // pred_fallthru
      _
    // Predicated region
    $region14: #{tpu_custom_call.1} parent=1 // pred_check
      _
    $region15: #{tpu_custom_call.1} parent=1 // pred_check_branch
      %21 = sbr.rel (0) target = $region17
    $region16: #{tpu_custom_call.1} parent=1 // pred_region
      _
    $region17: #{tpu_custom_call.1} parent=1 // pred_fallthru
      _
    // Predicated region
    $region18: #{tpu_custom_call.1} parent=1 // pred_check
      _
    $region19: #{tpu_custom_call.1} parent=1 // pred_check_branch
      %23 = sbr.rel (0) target = $region21
    $region20: #{tpu_custom_call.1} parent=1 // pred_region
      _
    $region21: #{tpu_custom_call.1} parent=1 // pred_fallthru
      _
    // Predicated region
    $region22: #{tpu_custom_call.1} parent=1 // pred_check
      _
    $region23: #{tpu_custom_call.1} parent=1 // pred_check_branch
      %25 = sbr.rel (0) target = $region25
    $region24: #{tpu_custom_call.1} parent=1 // pred_region
      _
    $region25: #{tpu_custom_call.1} parent=1 // pred_fallthru
      _
    // Predicated region
    $region26: #{tpu_custom_call.1} parent=1 // pred_check
      _
    $region27: #{tpu_custom_call.1} parent=1 // pred_check_branch
      %27 = sbr.rel (0) target = $region29
    $region28: #{tpu_custom_call.1} parent=1 // pred_region
      _
    $region29: #{tpu_custom_call.1} parent=1 // pred_fallthru
      _
    // Predicated region
    $region30: #{tpu_custom_call.1} parent=1 // pred_check
      _
    $region31: #{tpu_custom_call.1} parent=1 // pred_check_branch
      %29 = sbr.rel (0) target = $region33
    $region32: #{tpu_custom_call.1} parent=1 // pred_region
      _
    $region33: #{tpu_custom_call.1} parent=1 // pred_fallthru
      _
    %v30 = vld [vmem:[%s0] sm:$0xff]
    %v31 = vld [vmem:[%s3] sm:$0xff]
    %v32 = vld [vmem:[%s3 + $0x8] sm:$0xff]
    %v33 = vld [vmem:[%s3 + $0x10] sm:$0xff]
    %v34 = vld [vmem:[%s3 + $0x18] sm:$0xff]
    %v35 = vld [vmem:[%s4] sm:$0x1]
    %v37 = vperm.slane %v35, 0
    %vm39 = vcmask 261120
    %v41 = vsel %vm39, %v30, 0
    %43 = vmatpush.msra.mxu0 0.0
    %44 = vmatpush.msra.mxu0 0.0
    %45 = vmatpush.msra.mxu0 0.0
    %46 = vmatpush.msra.mxu0 0.0
    %47 = vmatpush.msra.mxu0 0.0
    %48 = vmatpush.msra.mxu0 0.0
    %49 = vmatpush.msra.mxu0 0.0
    %50 = vmatpush.msra.mxu0 0.0
    %51 = vmatpush.msra.mxu0 0.0
    %52 = vmatpush.msra.mxu0 0.0
    %53 = vmatpush.msra.mxu0 0.0
    %54 = vmatpush.msra.mxu0 0.0
    %55 = vmatpush.msra.mxu0 %v34
    %56 = vmatpush.msra.mxu0 %v33
    %57 = vmatpush.msra.mxu0 %v32
    %58 = vmatpush.msra.mxu0 %v31
    %59 = vmatmul.f32.gmra.mxu0 %v41
    %v60 = vpop.f32.mrf.mxu0
    %v61 = vadd.f32 %v37, %v60
    %62 = vdwg.mxu0
    %v63 = vld [vmem:[%s1] sm:$0xff]
    %v65 = vsel %vm39, %v63, 0
    %67 = vmatpush.msra.mxu0 0.0
    %68 = vmatpush.msra.mxu0 0.0
    %69 = vmatpush.msra.mxu0 0.0
    %70 = vmatpush.msra.mxu0 0.0
    %71 = vmatpush.msra.mxu0 0.0
    %72 = vmatpush.msra.mxu0 0.0
    %73 = vmatpush.msra.mxu0 0.0
    %74 = vmatpush.msra.mxu0 0.0
    %75 = vmatpush.msra.mxu0 0.0
    %76 = vmatpush.msra.mxu0 0.0
    %77 = vmatpush.msra.mxu0 0.0
    %78 = vmatpush.msra.mxu0 0.0
    %79 = vmatpush.msra.mxu0 %v34
    %80 = vmatpush.msra.mxu0 %v33
    %81 = vmatpush.msra.mxu0 %v32
    %82 = vmatpush.msra.mxu0 %v31
    %83 = vmatmul.f32.gmra.mxu0 %v65
    %v84 = vpop.f32.mrf.mxu0
    %v85 = vadd.f32 %v37, %v84
    %86 = vdwg.mxu0
    %v87 = vld [vmem:[%s5] sm:$0xff]
    %v88 = vld [vmem:[%s5 + $0x8] sm:$0xff]
    %v89 = vld [vmem:[%s5 + $0x10] sm:$0xff]
    %v90 = vld [vmem:[%s5 + $0x18] sm:$0xff]
    %v92 = vsel %vm39, %v61, 0
    %94 = vmatpush.msra.mxu0 0.0
    %95 = vmatpush.msra.mxu0 0.0
    %96 = vmatpush.msra.mxu0 0.0
    %97 = vmatpush.msra.mxu0 0.0
    %98 = vmatpush.msra.mxu0 0.0
    %99 = vmatpush.msra.mxu0 0.0
    %100 = vmatpush.msra.mxu0 0.0
    %101 = vmatpush.msra.mxu0 0.0
    %102 = vmatpush.msra.mxu0 0.0
    %103 = vmatpush.msra.mxu0 0.0
    %104 = vmatpush.msra.mxu0 0.0
    %105 = vmatpush.msra.mxu0 0.0
    %106 = vmatpush.msra.mxu0 %v90
    %107 = vmatpush.msra.mxu0 %v89
    %108 = vmatpush.msra.mxu0 %v88
    %109 = vmatpush.msra.mxu0 %v87
    %110 = vmatmul.f32.gmra.mxu0 %v92
    %v111 = vpop.f32.mrf.mxu0
    %v112 = vadd.f32 0.0, %v111
    %113 = vdwg.mxu0
    %v114 = vld [vmem:[%s6] sm:$0xff]
    %v115 = vld [vmem:[%s6 + $0x8] sm:$0xff]
    %v116 = vld [vmem:[%s6 + $0x10] sm:$0xff]
    %v117 = vld [vmem:[%s6 + $0x18] sm:$0xff]
    %v118 = vld [vmem:[%s7] sm:$0x1]
    %v120 = vperm.slane %v118, 0
    %v123 = vsel %vm39, %v85, 0
    %125 = vmatpush.msra.mxu0 0.0
    %126 = vmatpush.msra.mxu0 0.0
    %127 = vmatpush.msra.mxu0 0.0
    %128 = vmatpush.msra.mxu0 0.0
    %129 = vmatpush.msra.mxu0 0.0
    %130 = vmatpush.msra.mxu0 0.0
    %131 = vmatpush.msra.mxu0 0.0
    %132 = vmatpush.msra.mxu0 0.0
    %133 = vmatpush.msra.mxu0 0.0
    %134 = vmatpush.msra.mxu0 0.0
    %135 = vmatpush.msra.mxu0 0.0
    %136 = vmatpush.msra.mxu0 0.0
    %137 = vmatpush.msra.mxu0 %v117
    %138 = vmatpush.msra.mxu0 %v116
    %139 = vmatpush.msra.mxu0 %v115
    %140 = vmatpush.msra.mxu0 %v114
    %141 = vmatmul.f32.gmra.mxu0 %v123
    %v142 = vpop.f32.mrf.mxu0
    %v143 = vadd.f32 %v120, %v142
    %144 = vdwg.mxu0
    %145 = vxpose.xlu0.b32.start [1/16] %v112, 128
    %146 = vxpose.xlu0.b32.cont [2/16] 0.0, 128
    %147 = vxpose.xlu0.b32.cont [3/16] 0.0, 128
    %148 = vxpose.xlu0.b32.cont [4/16] 0.0, 128
    %149 = vxpose.xlu0.b32.cont [5/16] 0.0, 128
    %150 = vxpose.xlu0.b32.cont [6/16] 0.0, 128
    %151 = vxpose.xlu0.b32.cont [7/16] 0.0, 128
    %152 = vxpose.xlu0.b32.cont [8/16] 0.0, 128
    %153 = vxpose.xlu0.b32.cont [9/16] 0.0, 128
    %154 = vxpose.xlu0.b32.cont [10/16] 0.0, 128
    %155 = vxpose.xlu0.b32.cont [11/16] 0.0, 128
    %156 = vxpose.xlu0.b32.cont [12/16] 0.0, 128
    %157 = vxpose.xlu0.b32.cont [13/16] 0.0, 128
    %158 = vxpose.xlu0.b32.cont [14/16] 0.0, 128
    %159 = vxpose.xlu0.b32.cont [15/16] 0.0, 128
    %160 = vxpose.xlu0.b32.end [16/16] 0.0, 128
    %v161 = vpop.trf.xlu0
    %v162 = vpop.trf.xlu0
    %v163 = vpop.trf.xlu0
    %v164 = vpop.trf.xlu0
    %v165 = vpop.trf.xlu0
    %v166 = vpop.trf.xlu0
    %v167 = vpop.trf.xlu0
    %v168 = vpop.trf.xlu0
    %v169 = vpop.trf.xlu0
    %v170 = vpop.trf.xlu0
    %v171 = vpop.trf.xlu0
    %v172 = vpop.trf.xlu0
    %v173 = vpop.trf.xlu0
    %v174 = vpop.trf.xlu0
    %v175 = vpop.trf.xlu0
    %v176 = vpop.trf.xlu0
    %v177 = vld [vmem:[%s2] sm:$0xff]
    %vm178 = vcmp.gt.f32.partialorder %v177, 0.0
    %180 = vset.pattern.permute.xlu0 0
    %181 = vperm.xlu0 %180, %v143
    %v182 = vpop.permute.xlu0 %181
    %v184 = vperm.slane %v161, 0
    %v185 = vadd.f32 %v182, %v184
    %vm186 = vcmp.gt.f32.partialorder %v185, 0.0
    %v187 = vmul.f32 %v185, 0.2
    %v188 = vsel %vm186, %v185, %v187
    %v189 = vsel %vm178, %v188, -3.4028235e+38
    %vm190 = vcmask 64512
    %v191 = vsel %vm190, %v189, -inf
    %192 = vmax.xlane.f32.xlu0 %v191
    %v193 = vpop.xlane.xlu0 %192
    %v194 = vsub.f32 %v189, %v193
    %v195 = vmul.f32 %v194, 1.442695
    %v196 = vpow.pop %v195
    %v197 = vsel %vm190, %v196, 0.0
    %198 = vadd.xlane.f32.xlu0 %v197
    %v199 = vpop.xlane.xlu0 %198
    %v200 = vrcp.pop %v199
    %v201 = vmul.f32 %v196, %v200
    %v203 = vsel %vm190, %v201, 0
    %205 = vmatpush.msra.mxu0 0.0
    %206 = vmatpush.msra.mxu0 0.0
    %207 = vmatpush.msra.mxu0 0.0
    %208 = vmatpush.msra.mxu0 0.0
    %209 = vmatpush.msra.mxu0 0.0
    %210 = vmatpush.msra.mxu0 0.0
    %211 = vmatpush.msra.mxu0 0.0
    %212 = vmatpush.msra.mxu0 0.0
    %213 = vmatpush.msra.mxu0 0.0
    %214 = vmatpush.msra.mxu0 0.0
    %215 = vmatpush.msra.mxu0 0.0
    %216 = vmatpush.msra.mxu0 0.0
    %217 = vmatpush.msra.mxu0 0.0
    %218 = vmatpush.msra.mxu0 0.0
    %219 = vmatpush.msra.mxu0 0.0
    %220 = vmatpush.msra.mxu0 %v61
    %221 = vmatmul.f32.gmra.mxu0 %v203
    %v222 = vpop.f32.mrf.mxu0
    %v223 = vadd.f32 0.0, %v222
    %224 = vdwg.mxu0
    %225 = vset.pattern.permute.xlu0 1
    %226 = vperm.xlu0 %225, %v143
    %v227 = vpop.permute.xlu0 %226
    %v229 = vperm.slane %v161, 1
    %v230 = vadd.f32 %v227, %v229
    %vm231 = vcmp.gt.f32.partialorder %v230, 0.0
    %v232 = vmul.f32 %v230, 0.2
    %v233 = vsel %vm231, %v230, %v232
    %v234 = vsel %vm178, %v233, -3.4028235e+38
    %v235 = vsel %vm190, %v234, -inf
    %236 = vmax.xlane.f32.xlu0 %v235
    %v237 = vpop.xlane.xlu0 %236
    %v238 = vsub.f32 %v234, %v237
    %v239 = vmul.f32 %v238, 1.442695
    %v240 = vpow.pop %v239
    %v241 = vsel %vm190, %v240, 0.0
    %242 = vadd.xlane.f32.xlu0 %v241
    %v243 = vpop.xlane.xlu0 %242
    %v244 = vrcp.pop %v243
    %v245 = vmul.f32 %v240, %v244
    %246 = vrot.lane.b32.xlu0 %v61, 120
    %v247 = vpop.permute.xlu0 %246
    %v250 = vsel %vm190, %v245, 0
    %252 = vmatpush.msra.mxu0 0.0
    %253 = vmatpush.msra.mxu0 0.0
    %254 = vmatpush.msra.mxu0 0.0
    %255 = vmatpush.msra.mxu0 0.0
    %256 = vmatpush.msra.mxu0 0.0
    %257 = vmatpush.msra.mxu0 0.0
    %258 = vmatpush.msra.mxu0 0.0
    %259 = vmatpush.msra.mxu0 0.0
    %260 = vmatpush.msra.mxu0 0.0
    %261 = vmatpush.msra.mxu0 0.0
    %262 = vmatpush.msra.mxu0 0.0
    %263 = vmatpush.msra.mxu0 0.0
    %264 = vmatpush.msra.mxu0 0.0
    %265 = vmatpush.msra.mxu0 0.0
    %266 = vmatpush.msra.mxu0 0.0
    %267 = vmatpush.msra.mxu0 %v247
    %268 = vmatmul.f32.gmra.mxu0 %v250
    %v269 = vpop.f32.mrf.mxu0
    %v270 = vadd.f32 0.0, %v269
    %271 = vdwg.mxu0
    %272 = vset.pattern.permute.xlu0 2
    %273 = vperm.xlu0 %272, %v143
    %v274 = vpop.permute.xlu0 %273
    %v276 = vperm.slane %v161, 2
    %v277 = vadd.f32 %v274, %v276
    %vm278 = vcmp.gt.f32.partialorder %v277, 0.0
    %v279 = vmul.f32 %v277, 0.2
    %v280 = vsel %vm278, %v277, %v279
    %v281 = vsel %vm178, %v280, -3.4028235e+38
    %v282 = vsel %vm190, %v281, -inf
    %283 = vmax.xlane.f32.xlu0 %v282
    %v284 = vpop.xlane.xlu0 %283
    %v285 = vsub.f32 %v281, %v284
    %v286 = vmul.f32 %v285, 1.442695
    %v287 = vpow.pop %v286
    %v288 = vsel %vm190, %v287, 0.0
    %289 = vadd.xlane.f32.xlu0 %v288
    %v290 = vpop.xlane.xlu0 %289
    %v291 = vrcp.pop %v290
    %v292 = vmul.f32 %v287, %v291
    %293 = vrot.lane.b32.xlu0 %v61, 112
    %v294 = vpop.permute.xlu0 %293
    %v297 = vsel %vm190, %v292, 0
    %299 = vmatpush.msra.mxu0 0.0
    %300 = vmatpush.msra.mxu0 0.0
    %301 = vmatpush.msra.mxu0 0.0
    %302 = vmatpush.msra.mxu0 0.0
    %303 = vmatpush.msra.mxu0 0.0
    %304 = vmatpush.msra.mxu0 0.0
    %305 = vmatpush.msra.mxu0 0.0
    %306 = vmatpush.msra.mxu0 0.0
    %307 = vmatpush.msra.mxu0 0.0
    %308 = vmatpush.msra.mxu0 0.0
    %309 = vmatpush.msra.mxu0 0.0
    %310 = vmatpush.msra.mxu0 0.0
    %311 = vmatpush.msra.mxu0 0.0
    %312 = vmatpush.msra.mxu0 0.0
    %313 = vmatpush.msra.mxu0 0.0
    %314 = vmatpush.msra.mxu0 %v294
    %315 = vmatmul.f32.gmra.mxu0 %v297
    %v316 = vpop.f32.mrf.mxu0
    %v317 = vadd.f32 0.0, %v316
    %318 = vdwg.mxu0
    %319 = vset.pattern.permute.xlu0 3
    %320 = vperm.xlu0 %319, %v143
    %v321 = vpop.permute.xlu0 %320
    %v323 = vperm.slane %v161, 3
    %v324 = vadd.f32 %v321, %v323
    %vm325 = vcmp.gt.f32.partialorder %v324, 0.0
    %v326 = vmul.f32 %v324, 0.2
    %v327 = vsel %vm325, %v324, %v326
    %v328 = vsel %vm178, %v327, -3.4028235e+38
    %v329 = vsel %vm190, %v328, -inf
    %330 = vmax.xlane.f32.xlu0 %v329
    %v331 = vpop.xlane.xlu0 %330
    %v332 = vsub.f32 %v328, %v331
    %v333 = vmul.f32 %v332, 1.442695
    %v334 = vpow.pop %v333
    %v335 = vsel %vm190, %v334, 0.0
    %336 = vadd.xlane.f32.xlu0 %v335
    %v337 = vpop.xlane.xlu0 %336
    %v338 = vrcp.pop %v337
    %v339 = vmul.f32 %v334, %v338
    %340 = vrot.lane.b32.xlu0 %v61, 104
    %v341 = vpop.permute.xlu0 %340
    %v344 = vsel %vm190, %v339, 0
    %346 = vmatpush.msra.mxu0 0.0
    %347 = vmatpush.msra.mxu0 0.0
    %348 = vmatpush.msra.mxu0 0.0
    %349 = vmatpush.msra.mxu0 0.0
    %350 = vmatpush.msra.mxu0 0.0
    %351 = vmatpush.msra.mxu0 0.0
    %352 = vmatpush.msra.mxu0 0.0
    %353 = vmatpush.msra.mxu0 0.0
    %354 = vmatpush.msra.mxu0 0.0
    %355 = vmatpush.msra.mxu0 0.0
    %356 = vmatpush.msra.mxu0 0.0
    %357 = vmatpush.msra.mxu0 0.0
    %358 = vmatpush.msra.mxu0 0.0
    %359 = vmatpush.msra.mxu0 0.0
    %360 = vmatpush.msra.mxu0 0.0
    %361 = vmatpush.msra.mxu0 %v341
    %362 = vmatmul.f32.gmra.mxu0 %v344
    %v363 = vpop.f32.mrf.mxu0
    %v364 = vadd.f32 0.0, %v363
    %365 = vdwg.mxu0
    %367 = vrot.lane.b32.xlu0 %v270, 8
    %v368 = vpop.permute.xlu0 %367
    %371 = vrot.lane.b32.xlu0 %v317, 16
    %v372 = vpop.permute.xlu0 %371
    %375 = vrot.lane.b32.xlu0 %v364, 24
    %v376 = vpop.permute.xlu0 %375
    %v378 = vsel %vm190, %v223, %v368
    %vm379 = vcmask 130048
    %v380 = vsel %vm379, %v378, %v372
    %vm381 = vcmask 195584
    %v382 = vsel %vm381, %v380, %v376
    %383 = vst.msk [vmem:[#allocation2] sm:$0xff] %vm39, %v382
    // Predicated region
    $region34: #{tpu_custom_call.1} parent=1 // pred_check
      _
    $region35: #{tpu_custom_call.1} parent=1 // pred_check_branch
      %385 = sbr.rel (0) target = $region37
    $region36: #{tpu_custom_call.1} parent=1 // pred_region
      %387 = vsyncadd [#allocation3], 0
      %s389 = sshll.u32 [#allocation2], 4
      %s390 = int_to_ptr.vmem [resolvable:$true] %s389
      %s391 = sshll.u32 %s8, 4
      %s392 = int_to_ptr.hbm [resolvable:$true] %s391
      %394 = dma.vmem_to_hbm [thread:$0]  %s390, 128, %s392, [#allocation3]
    $region37: #{tpu_custom_call.1} parent=1 // pred_fallthru
      _
    // Predicated region
    $region38: #{tpu_custom_call.1} parent=1 // pred_check
      _
    $region39: #{tpu_custom_call.1} parent=1 // pred_check_branch
      %396 = sbr.rel (0) target = $region41
    $region40: #{tpu_custom_call.1} parent=1 // pred_region
      %398 = dma.done [#allocation3], 128
    $region41: #{tpu_custom_call.1} parent=1 // pred_fallthru
      _
    %399 = vsyncpa [#allocation3], 1

</llo_original>
